<compile_context>
chip_gen: v7x
topology: tpu7x:2x2x1
jax: 0.10.0
libtpu: 0.0.40
codegen_flags: <defaults>
</compile_context>

<pallas_src>
import functools

import jax
import jax.numpy as jnp
from jax.experimental import pallas as pl
from jax.experimental.pallas import tpu as pltpu


@functools.lru_cache(maxsize=None)
def _num_tensorcores() -> int:
    """Best-effort TensorCore count (1 on v5e/v6e, 2 on v7x); safe fallback 1."""
    try:
        info = pltpu.get_tpu_info()
    except Exception:
        return 1
    for attr in ("num_cores", "core_count", "num_tensorcores", "tensorcore_count"):
        v = getattr(info, attr, None)
        if isinstance(v, int) and v > 0:
            return v
    return 1


def _choose_class_tile(n_cls, per_class_bytes, target_bytes, num_cores):
    """Largest divisor of n_cls whose ctx-row block fits target_bytes.

    Avoids padding / output slicing entirely.  If the chip has >1 TensorCore,
    prefer a divisor that yields >= num_cores grid steps so the parallel axis
    can be sharded; on single-TC chips keep one big step (no per-step overhead).
    """
    divisors = [t for t in range(1, n_cls + 1) if n_cls % t == 0]
    fitting = [t for t in divisors if t * per_class_bytes <= target_bytes] or [1]
    c_tile = max(fitting)
    if num_cores > 1:
        multi = [t for t in fitting if (n_cls // t) >= num_cores]
        if multi:
            c_tile = max(multi)
    return c_tile


def _write_ctx_rows_kernel(tmpl_ref, ctx_ref, out_ref, buf_ref, sem, *,
                           c_tile, n_ctx, shared_ctx):
    # tmpl_ref : (n_cls, S, D) in HBM (pl.ANY) -- only present for the output alias.
    # ctx_ref  : (n_ctx, D) resident shared ctx, or (c_tile, n_ctx, D) per-tile ctx.
    # out_ref  : (n_cls, S, D) in HBM (pl.ANY), aliased to tmpl_ref's buffer.
    # buf_ref  : (c_tile, n_ctx, D) VMEM staging tile for the ctx rows.
    del tmpl_ref  # prefix/suffix rows are already correct in the aliased output.
    c0 = pl.program_id(0) * c_tile
    if shared_ctx:
        # Broadcast the shared (n_ctx, D) context across the classes of this tile.
        buf_ref[...] = jnp.broadcast_to(ctx_ref[...][None, :, :], buf_ref.shape)
    else:
        buf_ref[...] = ctx_ref[...]
    # Write ONLY the context rows [1, 1+n_ctx) of each class; prefix/suffix rows
    # in HBM are untouched (they came from the aliased template).
    cp = pltpu.make_async_copy(
        buf_ref, out_ref.at[pl.ds(c0, c_tile), pl.ds(1, n_ctx), :], sem)
    cp.start()
    cp.wait()


def init_prompts_template(token_prefix, token_suffix, n_ctx):
    """One-time (init) assembly of the persistent [prefix | 0 | suffix] buffer.

    Mirrors the register_buffer setup of the PyTorch module; the zeroed ctx rows
    are overwritten on every forward call.
    """
    n_cls, _, d = token_prefix.shape
    ctx_slot = jnp.zeros((n_cls, n_ctx, d), token_prefix.dtype)
    return jnp.concatenate([token_prefix, ctx_slot, token_suffix], axis=1)


@functools.partial(jax.jit, donate_argnums=(0,),
                   static_argnames=("target_block_bytes",))
def prompt_learner_forward(prompts_template, ctx, *, target_block_bytes=2 << 20):
    """prompts = concat([prefix, ctx, suffix], axis=1) for 'end' token position.

    prompts_template: (n_cls, S, D) persistent [prefix | * | suffix] buffer
                      (donated; the previous forward's output can be reused here,
                      its prefix/suffix rows are never modified).
    ctx:              (n_ctx, D) generic, or (n_cls, n_ctx, D) class-specific.
    returns:          (n_cls, S, D) prompts (same buffer, ctx rows rewritten).
    """
    n_cls, seq_len, d = prompts_template.shape
    out_dtype = prompts_template.dtype
    n_ctx = ctx.shape[-2]
    shared_ctx = ctx.ndim == 2
    assert 1 + n_ctx <= seq_len

    # Cast once here (not per grid step inside the kernel).
    ctx = ctx.astype(out_dtype)

    itemsize = jnp.dtype(out_dtype).itemsize
    per_class_ctx_bytes = n_ctx * d * itemsize
    c_tile = _choose_class_tile(n_cls, per_class_ctx_bytes, target_block_bytes,
                                _num_tensorcores())
    n_blocks = n_cls // c_tile

    # Template & output stay in HBM (no auto-DMA); the output is aliased to the
    # template so only the ctx rows ever move.
    tmpl_spec = pl.BlockSpec(memory_space=pl.ANY)
    out_spec = pl.BlockSpec(memory_space=pl.ANY)

    if shared_ctx:
        # Same block index every step -> shared ctx stays resident in VMEM.
        ctx_spec = pl.BlockSpec((n_ctx, d), lambda i: (0, 0))
        ctx_read_bytes = n_ctx * d * itemsize
    else:
        ctx_spec = pl.BlockSpec((c_tile, n_ctx, d), lambda i: (i, 0, 0))
        ctx_read_bytes = n_cls * n_ctx * d * itemsize
    ctx_write_bytes = n_cls * n_ctx * d * itemsize

    kernel = functools.partial(_write_ctx_rows_kernel, c_tile=c_tile,
                               n_ctx=n_ctx, shared_ctx=shared_ctx)

    return pl.pallas_call(
        kernel,
        out_shape=jax.ShapeDtypeStruct((n_cls, seq_len, d), out_dtype),
        grid_spec=pltpu.PrefetchScalarGridSpec(
            num_scalar_prefetch=0,
            grid=(n_blocks,),
            in_specs=[tmpl_spec, ctx_spec],
            out_specs=out_spec,
            scratch_shapes=[
                pltpu.VMEM((c_tile, n_ctx, d), out_dtype),
                pltpu.SemaphoreType.DMA,
            ],
        ),
        input_output_aliases={0: 0},   # template buffer becomes the output
        compiler_params=pltpu.CompilerParams(
            dimension_semantics=("parallel",)),
        cost_estimate=pl.CostEstimate(
            flops=0, transcendentals=0,
            bytes_accessed=int(ctx_read_bytes + ctx_write_bytes)),
    )(prompts_template, ctx)


if __name__ == "__main__":
    # Small shapes consistent with the module:
    #   n_cls classes, n_ctx learnable context tokens, sequence length S, embed dim D.
    n_cls, n_ctx, seq_len, d = 4, 4, 16, 128
    dtype = jnp.float32

    key = jax.random.PRNGKey(0)
    k_ctx, k_emb = jax.random.split(key)

    # nn.init.normal_(ctx_vectors, std=0.02) -- generic context (ctx.dim() == 2 path)
    ctx = (0.02 * jax.random.normal(k_ctx, (n_ctx, d))).astype(dtype)

    # Synthetic CLIP token embeddings of the tokenized prompts (deterministic).
    # TODO(synk): real tokenizer/token_embedding lookup is host-side init-time
    # preprocessing, not kernel work.
    embedding = jax.random.normal(k_emb, (n_cls, seq_len, d)).astype(dtype)
    token_prefix = embedding[:, :1, :]             # SOS
    token_suffix = embedding[:, 1 + n_ctx:, :]     # class name + EOS + padding

    # --- init: persistent [prefix | 0 | suffix] template (built once).
    template = init_prompts_template(token_prefix, token_suffix, n_ctx)

    # Forward 1: generic (shared) context.
    prompts = jax.block_until_ready(prompt_learner_forward(template, ctx))
    ref = jnp.concatenate(
        [token_prefix, jnp.broadcast_to(ctx[None], (n_cls, n_ctx, d)), token_suffix],
        axis=1)
    assert prompts.shape == (n_cls, seq_len, d), prompts.shape
    assert jnp.allclose(prompts, ref), "mismatch vs reference (generic ctx)"

    # Forward 2: steady-state persistent-buffer pattern -- reuse the previous
    # output as the next template (its prefix/suffix rows are intact) with a
    # fresh ctx, as happens every optimizer step in LoCoOp training.
    ctx_b = (0.02 * jax.random.normal(jax.random.PRNGKey(1), (n_ctx, d))).astype(dtype)
    prompts_b = jax.block_until_ready(prompt_learner_forward(prompts, ctx_b))
    ref_b = jnp.concatenate(
        [token_prefix, jnp.broadcast_to(ctx_b[None], (n_cls, n_ctx, d)), token_suffix],
        axis=1)
    assert jnp.allclose(prompts_b, ref_b), "mismatch vs reference (updated ctx)"

    # Forward 3: class-specific context path (ctx.dim() == 3).
    ctx3 = (0.02 * jax.random.normal(k_ctx, (n_cls, n_ctx, d))).astype(dtype)
    template3 = init_prompts_template(token_prefix, token_suffix, n_ctx)
    prompts3 = jax.block_until_ready(prompt_learner_forward(template3, ctx3))
    ref3 = jnp.concatenate([token_prefix, ctx3, token_suffix], axis=1)
    assert jnp.allclose(prompts3, ref3), "mismatch vs reference (class-specific ctx)"

    # Forward 4: class count with no "nice" tiling (n_cls=5) -- handled with a
    # divisor tile (no padding, no output slice).
    n_cls5 = 5
    emb5 = jax.random.normal(k_emb, (n_cls5, seq_len, d)).astype(dtype)
    pref5, suff5 = emb5[:, :1, :], emb5[:, 1 + n_ctx:, :]
    template5 = init_prompts_template(pref5, suff5, n_ctx)
    prompts5 = jax.block_until_ready(prompt_learner_forward(template5, ctx))
    ref5 = jnp.concatenate(
        [pref5, jnp.broadcast_to(ctx[None], (n_cls5, n_ctx, d)), suff5], axis=1)
    assert prompts5.shape == (n_cls5, seq_len, d), prompts5.shape
    assert jnp.allclose(prompts5, ref5), "mismatch vs reference (n_cls=5)"

    # TODO(synk): class_token_position 'middle'/'front' (per-class ragged splits by
    # name_lens) are not implemented; 'end' is the default CoOp/LoCoOp configuration.
    print("KERNEL_OK")
</pallas_src>

<mosaic_0001>
module attributes {stable_mosaic.version = 11 : i64} {
  func.func @_write_ctx_rows_kernel(%arg0: i32, %arg1: memref<4x16x128xf32, #tpu.memory_space<any>>, %arg2: memref<4x128xf32, #tpu.memory_space<vmem>>, %arg3: memref<4x16x128xf32, #tpu.memory_space<any>>, %arg4: memref<4x4x128xf32, #tpu.memory_space<vmem>>, %arg5: memref<!tpu.dma_semaphore, #tpu.memory_space<semaphore_mem>>) attributes {dimension_semantics = [#tpu.dimension_semantics<parallel>], iteration_bounds = array<i64: 1>, scalar_prefetch = 0 : i64, scratch_operands = 2 : i64, tpu.core_type = #tpu.core_type<tc>, window_params = [{}, {pipeline_mode = #tpu.pipeline_mode<synchronous>, transform_indices = @transform_1, window_bounds = array<i64: 4, 128>}, {}]} {
    %c4_i32 = arith.constant 4 : i32
    %0 = arith.muli %arg0, %c4_i32 : i32
    %c0 = arith.constant 0 : index
    %c0_0 = arith.constant 0 : index
    %1 = vector.load %arg2[%c0, %c0_0] : memref<4x128xf32, #tpu.memory_space<vmem>>, vector<4x128xf32>
    %2 = vector.shape_cast %1 : vector<4x128xf32> to vector<1x4x128xf32>
    %3 = vector.shape_cast %2 : vector<1x4x128xf32> to vector<1x4x128xf32>
    %4 = vector.broadcast %3 : vector<1x4x128xf32> to vector<4x4x128xf32>
    %c0_1 = arith.constant 0 : index
    %c0_2 = arith.constant 0 : index
    %c0_3 = arith.constant 0 : index
    %5 = vector.load %arg4[%c0_1, %c0_2, %c0_3] : memref<4x4x128xf32, #tpu.memory_space<vmem>>, vector<4x4x128xf32>
    tpu.vector_store %arg4[%c0_1, %c0_2, %c0_3], %4 {strides = array<i32>} : memref<4x4x128xf32, #tpu.memory_space<vmem>>, vector<4x4x128xf32>,
    %c1_i32 = arith.constant 1 : i32
    %c0_i32 = arith.constant 0 : i32
    %6 = tpu.memref_slice %arg3[%0, %c1_i32, %c0_i32] : memref<4x16x128xf32, #tpu.memory_space<any>> -> memref<4x4x128xf32, #tpu.memory_space<any>>
    tpu.enqueue_dma source(%arg4 : memref<4x4x128xf32, #tpu.memory_space<vmem>>) target(%6 : memref<4x4x128xf32, #tpu.memory_space<any>>) target_semaphore(%arg5 : memref<!tpu.dma_semaphore, #tpu.memory_space<semaphore_mem>>)
    %c1_i32_4 = arith.constant 1 : i32
    %c0_i32_5 = arith.constant 0 : i32
    %7 = tpu.memref_slice %arg3[%0, %c1_i32_4, %c0_i32_5] : memref<4x16x128xf32, #tpu.memory_space<any>> -> memref<4x4x128xf32, #tpu.memory_space<any>>
    tpu.wait_dma2 semaphore(%arg5 : memref<!tpu.dma_semaphore, #tpu.memory_space<semaphore_mem>>) src(%arg4 : memref<4x4x128xf32, #tpu.memory_space<vmem>>) dst(%7 : memref<4x4x128xf32, #tpu.memory_space<any>>)
    return
  }
  func.func @transform_1(%arg0: i32) -> (i32, i32) {
    %c0_i32 = arith.constant 0 : i32
    %c0_i32_0 = arith.constant 0 : i32
    %c0_i32_1 = arith.constant 0 : i32
    return %c0_i32, %c0_i32_0 : i32, i32
  }
}

</mosaic_0001>

<llo_original>
// kernel: prompt_learner_forward.1
$region0: #{prompt_learner_forward.1}
  #allocation0 [shape = 'u32[]', space=smem, size = 0x4, offset = 0x4, fixed_abs, tag = 'smem constant byte address 0x4 - core index']
  #allocation1 [shape = 'u32[144,128]{1,0:T(1,128)}', space=vmem, size = 0x12000, scoped, tag = 'internal scratch']
  #allocation2 [shape = 'f32[4,4,128]{2,1,0:T(4,128)}', space=vmem, size = 0x2000, scoped, tag = 'scratch operand']
  #allocation3 [shape = 's32[1]{0}', space=sflag, size = 0x4, scoped, tag = 'scratch operand']
  #allocation6 [shape = 's32[]', space=sflag, size = 0x4, offset = 0, fixed_abs, tag = 'sflag constant byte address 0x0 - dummy sync flag']
  %s0 = inlined_call_operand.hbm [shape: f32[4,16,128], index: 0, kind: input, shape index: {}, may-alias: {0,2}]
  %s1 = inlined_call_operand.hbm [shape: f32[4,128], index: 1, kind: input, shape index: {}]
  %s2 = inlined_call_operand.hbm [shape: f32[4,16,128], index: 2, kind: output, shape index: {}, may-alias: {0,2}]
  %s3 = sld [smem:[#allocation0]]
  $region10: #{prompt_learner_forward.1} parent=0
    _
  %s5 = ssub.s32 1, %s3
  %s6 = scalar_select 0, %s5, %s3
  $region1: #{prompt_learner_forward.1} parent=0
    #allocation4 [shape = 'u8[2048]{0}', space=vmem, size = 0x800, scoped, tag = 'input window, operand 1, single buffered']
    #allocation5 [shape = 's32[1]{0}', space=sflag, size = 0x4, scoped, tag = 'scoped memory for prompt_learner_forward.1']
    %7 = vsyncpa [#allocation5], 0
    // Predicated region
    $region2: #{prompt_learner_forward.1} parent=1 // pred_check
      _
    $region3: #{prompt_learner_forward.1} parent=1 // pred_check_branch
      %9 = sbr.rel (0) target = $region5
    $region4: #{prompt_learner_forward.1} parent=1 // pred_region
      %s11 = ssub.s32 64, 64
      %12 = vsyncadd [#allocation5], %s11
      %s14 = sshll.u32 [#allocation4], 4
      %s15 = int_to_ptr.vmem [resolvable:$true] %s14
      %17 = dma.hbm_to_vmem [thread:$0]  %s1, 64, %s15, [#allocation5]
    $region5: #{prompt_learner_forward.1} parent=1 // pred_fallthru
      _
    // Predicated region
    $region6: #{prompt_learner_forward.1} parent=1 // pred_check
      _
    $region7: #{prompt_learner_forward.1} parent=1 // pred_check_branch
      %19 = sbr.rel (0) target = $region9
    $region8: #{prompt_learner_forward.1} parent=1 // pred_region
      %20 = dma.done [#allocation5], 64
    $region9: #{prompt_learner_forward.1} parent=1 // pred_fallthru
      _
    %s21 = smul.u32 0, 4
    %v22 = vld [vmem:[#allocation4] sm:$0xf]
    %23 = vst [vmem:[#allocation2] sm:$0xf] %v22
    %24 = vst [vmem:[#allocation2 + $0x4] sm:$0xf] %v22
    %25 = vst [vmem:[#allocation2 + $0x8] sm:$0xf] %v22
    %26 = vst [vmem:[#allocation2 + $0xc] sm:$0xf] %v22
    %s27 = smul.u32 %s21, 16
    %s28 = sadd.s32 1, %s27
    %s29 = smul.addr %s28, 16
    %s30 = scalar_lea.hbm %s2, %s29
    %s32 = sshll.u32 [#allocation2], 4
    %s33 = int_to_ptr.vmem [resolvable:$true] %s32
    %35 = dma.vmem_to_hbm [thread:$0]  %s33, 256, %s30, [#allocation3], 64, 256, 4
    %s36 = smul.u32 4, 4
    %s37 = smul.u32 %s36, 1
    %s38 = sshll.u32 %s37, 4
    %39 = dma.done [#allocation3], %s38
    %40 = vsyncpa [#allocation5], 1
  %41 = vsyncmov [#allocation3]
  %s42 = vpop.sfrf %41
  %p43 = scmp.eq.s32.totalorder %s42, 0
  %p44 = pneg %p43
  %46 = shalt.err (%p44)

</llo_original>
